<compile_context>
chip_gen: v7x
topology: tpu7x:2x2x1
jax: 0.10.0
libtpu: 0.0.40
codegen_flags: <defaults>
</compile_context>

<pallas_src>
import numpy as np
import jax
import jax.numpy as jnp
from jax import lax
from jax.experimental import pallas as pl
from jax.experimental.pallas import tpu as pltpu

_LANE = 128
_SUBLANE = 8


# ----------------------------- Pallas kernel --------------------------------
def _make_tree_rnn_kernel(num_chunks, chunk_rows, gather_unroll):
    T = chunk_rows

    def kernel(node_ref, left_ref, right_ref,            # SMEM scalar prefetch
               leaf_hbm, wfc_ref, bfc2_ref, wp_ref, bp_ref,  # inputs
               out_ref,                                   # (Np, Lp) lane-dense
               h_ref, stage_ref, dma_sem):                # scratch
        # (1) Leaf init: DMA the (Np, Ep) leaf/zero slab HBM -> h scratch.
        #     No VMEM-resident input block, no vld/vst copy pass.
        cp = pltpu.make_async_copy(leaf_hbm, h_ref, dma_sem)
        cp.start()
        cp.wait()

        wfc = wfc_ref[...]       # hoisted: loaded once, reused every chunk
        bfc2 = bfc2_ref[...]     # = 2 * b_fcl (fused bias for both children)

        # (2) Level/wavefront-batched recurrence.  Chunks are ordered by tree
        #     depth, so every child row is written before its parent reads it.
        #     Padded slots duplicate the chunk's last (node,left,right) triple,
        #     which makes the duplicate scatter writes idempotent.
        def chunk_body(c, carry):
            base = c * T

            def gather(r, cc):
                idx = base + r
                stage_ref[pl.ds(r, 1), :] = (
                    h_ref[pl.ds(left_ref[idx], 1), :]
                    + h_ref[pl.ds(right_ref[idx], 1), :])
                return cc

            lax.fori_loop(0, T, gather, 0, unroll=gather_unroll)

            # relu(fcl(left) + fcl(right)) == relu((hl + hr) @ Wfc^T + 2*b)
            stage_ref[...] = jnp.maximum(
                jnp.dot(stage_ref[...], wfc,
                        preferred_element_type=jnp.float32) + bfc2,
                0.0)

            def scatter(r, cc):
                idx = base + r
                h_ref[pl.ds(node_ref[idx], 1), :] = stage_ref[pl.ds(r, 1), :]
                return cc

            lax.fori_loop(0, T, scatter, 0, unroll=gather_unroll)
            return carry

        if num_chunks > 0:
            lax.fori_loop(0, num_chunks, chunk_body, 0)

        # (3) One batched projection for every node, single lane-dense store.
        # TODO(synk): tile this over Np (e.g. 512-row blocks) for huge trees on
        #             v7x's 64 MiB VMEM.
        out_ref[...] = (jnp.dot(h_ref[...], wp_ref[...],
                                preferred_element_type=jnp.float32)
                        + bp_ref[...])

    return kernel


# ------------------------------ wrapper --------------------------------------
def rnn_model_forward(is_leaf, word_id, left_idx, right_idx,
                      embedding, w_fcl, b_fcl, w_proj, b_proj):
    is_leaf = np.asarray(is_leaf, np.int32)
    word_id = np.asarray(word_id, np.int32)
    left_idx = np.asarray(left_idx, np.int32)
    right_idx = np.asarray(right_idx, np.int32)

    N = int(is_leaf.shape[0])
    V, E = embedding.shape
    L = int(w_proj.shape[0])

    Ep = max(_LANE, pl.cdiv(E, _LANE) * _LANE)    # lane-pad hidden dim
    Lp = max(_LANE, pl.cdiv(L, _LANE) * _LANE)    # lane-pad label dim
    Np = pl.cdiv(N, _SUBLANE) * _SUBLANE          # sublane-pad node count

    # ---- level / wavefront schedule (host side) ------------------------------
    # depth(leaf)=0; depth(internal)=max(child depths)+1.  Post-order input
    # guarantees children precede parents, so one forward pass suffices.
    depth = np.zeros((N,), np.int32)
    for n in range(N):
        if not is_leaf[n]:
            depth[n] = max(depth[left_idx[n]], depth[right_idx[n]]) + 1

    internal_mask = (is_leaf == 0)
    M = int(internal_mask.sum())
    max_depth = int(depth.max()) if M > 0 else 0

    if M > 0:
        level_sizes = [int(((depth == d) & internal_mask).sum())
                       for d in range(1, max_depth + 1)]
        max_level = max(level_sizes)
        # One chunk = one MXU pass; cap at 128 rows (v5e MXU width), sublane-pad.
        T = min(_LANE, max(_SUBLANE, pl.cdiv(max_level, _SUBLANE) * _SUBLANE))
    else:
        T = _SUBLANE

    node_chunks, left_chunks, right_chunks = [], [], []
    for d in range(1, max_depth + 1):
        lvl = np.nonzero(internal_mask & (depth == d))[0].astype(np.int32)
        for s in range(0, lvl.shape[0], T):
            chunk = lvl[s:s + T]
            if chunk.shape[0] < T:   # pad by duplicating the last real entry
                chunk = np.concatenate(
                    [chunk, np.full((T - chunk.shape[0],), chunk[-1], np.int32)])
            node_chunks.append(chunk)
            left_chunks.append(left_idx[chunk])
            right_chunks.append(right_idx[chunk])

    num_chunks = len(node_chunks)
    if num_chunks > 0:
        node_sched = np.concatenate(node_chunks).astype(np.int32)
        left_sched = np.concatenate(left_chunks).astype(np.int32)
        right_sched = np.concatenate(right_chunks).astype(np.int32)
    else:
        node_sched = np.zeros((T,), np.int32)
        left_sched = np.zeros((T,), np.int32)
        right_sched = np.zeros((T,), np.int32)

    # ---- batched leaf gather (vocab table never enters VMEM) -----------------
    emb = jnp.asarray(embedding, jnp.float32)
    leaf_rows = jnp.take(emb, jnp.asarray(word_id), axis=0)            # (N, E)
    leaf_h = jnp.where(jnp.asarray(is_leaf)[:, None] == 1, leaf_rows, 0.0)
    leaf_h = jnp.pad(leaf_h, ((0, Np - N), (0, Ep - E)))               # (Np, Ep)

    # ---- pre-transposed, zero-padded weights (padding inert: relu(0)=0) ------
    wfc_t = jnp.zeros((Ep, Ep), jnp.float32).at[:E, :E].set(
        jnp.asarray(w_fcl, jnp.float32).T)
    bfc2 = jnp.zeros((1, Ep), jnp.float32).at[0, :E].set(
        2.0 * jnp.asarray(b_fcl, jnp.float32))
    wp_t = jnp.zeros((Ep, Lp), jnp.float32).at[:E, :L].set(
        jnp.asarray(w_proj, jnp.float32).T)
    bp = jnp.zeros((1, Lp), jnp.float32).at[0, :L].set(
        jnp.asarray(b_proj, jnp.float32))

    grid_spec = pltpu.PrefetchScalarGridSpec(
        num_scalar_prefetch=3,          # node / left / right chunk schedules
        grid=(1,),                      # single step; recurrence is in-kernel
        in_specs=[
            pl.BlockSpec(memory_space=pl.ANY),              # leaf slab (HBM)
            pl.BlockSpec((Ep, Ep), lambda i, *_: (0, 0)),    # fcl weight (in,out)
            pl.BlockSpec((1, Ep), lambda i, *_: (0, 0)),     # 2 * fcl bias
            pl.BlockSpec((Ep, Lp), lambda i, *_: (0, 0)),    # projection weight
            pl.BlockSpec((1, Lp), lambda i, *_: (0, 0)),     # projection bias
        ],
        out_specs=pl.BlockSpec((Np, Lp), lambda i, *_: (0, 0)),
        scratch_shapes=[
            pltpu.VMEM((Np, Ep), jnp.float32),   # hidden states
            pltpu.VMEM((T, Ep), jnp.float32),    # per-chunk staging tile
            pltpu.SemaphoreType.DMA,             # leaf-slab DMA completion
        ],
    )

    kernel = _make_tree_rnn_kernel(num_chunks, T, gather_unroll=min(T, 8))

    vmem_bytes = 4 * (Np * Ep + T * Ep + 2 * (Ep * Ep + Ep + Ep * Lp + Lp)
                      + 2 * Np * Lp)
    vmem_limit = int(min(max(2 * vmem_bytes, 16 << 20), 64 << 20))

    out_padded = pl.pallas_call(
        kernel,
        out_shape=jax.ShapeDtypeStruct((Np, Lp), jnp.float32),
        grid_spec=grid_spec,
        compiler_params=pltpu.CompilerParams(
            dimension_semantics=("arbitrary",),
            vmem_limit_bytes=vmem_limit),
    )(jnp.asarray(node_sched), jnp.asarray(left_sched), jnp.asarray(right_sched),
      leaf_h, wfc_t, bfc2, wp_t, bp)

    # Restore the torch output layout: (N, 1, label_size).
    return out_padded[:N, :L].reshape(N, 1, L)


# --------------------- tree construction / linearization ---------------------
class _Node:
    def __init__(self, word=None, left=None, right=None):
        self.word = word
        self.left = left
        self.right = right
        self.isLeaf = word is not None


def linearize_postorder(root):
    """Mirror walk_tree's node_list append order (post-order)."""
    is_leaf, word_id, left_idx, right_idx = [], [], [], []

    def walk(node):
        if node.isLeaf:
            idx = len(is_leaf)
            is_leaf.append(1); word_id.append(int(node.word))
            left_idx.append(0); right_idx.append(0)
            return idx
        l = walk(node.left)
        r = walk(node.right)
        idx = len(is_leaf)
        is_leaf.append(0); word_id.append(0)
        left_idx.append(l); right_idx.append(r)
        return idx

    walk(root)
    arrs = (is_leaf, word_id, left_idx, right_idx)
    return tuple(np.asarray(a, np.int32) for a in arrs)


# ------------------------------ reference ------------------------------------
def reference_forward(is_leaf, word_id, left_idx, right_idx,
                      emb, w_fcl, b_fcl, w_proj, b_proj):
    """Torch-faithful numpy reference (separate fcl(left) + fcl(right))."""
    N, E = is_leaf.shape[0], emb.shape[1]
    L = w_proj.shape[0]
    h = np.zeros((N, E), np.float32)
    out = np.zeros((N, 1, L), np.float32)
    for n in range(N):
        if is_leaf[n]:
            h[n] = emb[word_id[n]]
        else:
            z = (h[left_idx[n]] @ w_fcl.T + b_fcl
                 + h[right_idx[n]] @ w_fcl.T + b_fcl)
            h[n] = np.maximum(z, 0.0)
        out[n, 0] = h[n] @ w_proj.T + b_proj
    return out


# --------------------------------- main ---------------------------------------
if __name__ == "__main__":
    VOCAB = 64
    EMBED = 32
    LABEL = 3
    N_LEAVES = 8

    key = jax.random.PRNGKey(0)
    k_emb, k_fw, k_fb, k_pw, k_pb, k_words = jax.random.split(key, 6)

    # Deterministic synthetic parameters (nn.Embedding / nn.Linear shapes).
    embedding = 0.1 * jax.random.normal(k_emb, (VOCAB, EMBED), jnp.float32)
    w_fcl = 0.1 * jax.random.normal(k_fw, (EMBED, EMBED), jnp.float32)   # (out, in)
    b_fcl = 0.1 * jax.random.normal(k_fb, (EMBED,), jnp.float32)
    w_proj = 0.1 * jax.random.normal(k_pw, (LABEL, EMBED), jnp.float32)  # (out, in)
    b_proj = 0.1 * jax.random.normal(k_pb, (LABEL,), jnp.float32)

    # Deterministic synthetic parse tree: balanced binary tree with 8 leaves.
    word_ids = jax.random.randint(k_words, (N_LEAVES,), 0, VOCAB)
    leaves = [_Node(word=int(w)) for w in np.asarray(word_ids)]
    level = leaves
    while len(level) > 1:
        level = [_Node(left=level[i], right=level[i + 1])
                 for i in range(0, len(level), 2)]
    root = level[0]

    is_leaf, word_id, left_idx, right_idx = linearize_postorder(root)

    out = rnn_model_forward(is_leaf, word_id, left_idx, right_idx,
                            embedding, w_fcl, b_fcl, w_proj, b_proj)
    out = jax.block_until_ready(out)

    ref = reference_forward(is_leaf, word_id, left_idx, right_idx,
                            np.asarray(embedding), np.asarray(w_fcl),
                            np.asarray(b_fcl), np.asarray(w_proj),
                            np.asarray(b_proj))
    np.testing.assert_allclose(np.asarray(out), ref, rtol=1e-3, atol=1e-3)

    print("KERNEL_OK")
</pallas_src>

<mosaic_0001>
module attributes {stable_mosaic.version = 11 : i64} {
  func.func @kernel(%arg0: i32, %arg1: memref<24xi32, #tpu.memory_space<smem>>, %arg2: memref<24xi32, #tpu.memory_space<smem>>, %arg3: memref<24xi32, #tpu.memory_space<smem>>, %arg4: memref<16x128xf32, #tpu.memory_space<any>>, %arg5: memref<128x128xf32, #tpu.memory_space<vmem>>, %arg6: memref<1x128xf32, #tpu.memory_space<vmem>>, %arg7: memref<128x128xf32, #tpu.memory_space<vmem>>, %arg8: memref<1x128xf32, #tpu.memory_space<vmem>>, %arg9: memref<16x128xf32, #tpu.memory_space<vmem>>, %arg10: memref<16x128xf32, #tpu.memory_space<vmem>>, %arg11: memref<8x128xf32, #tpu.memory_space<vmem>>, %arg12: memref<!tpu.dma_semaphore, #tpu.memory_space<semaphore_mem>>) attributes {dimension_semantics = [#tpu.dimension_semantics<arbitrary>], iteration_bounds = array<i64: 1>, scalar_prefetch = 3 : i64, scratch_operands = 3 : i64, tpu.core_type = #tpu.core_type<tc>, window_params = [{}, {pipeline_mode = #tpu.pipeline_mode<synchronous>, transform_indices = @transform_1, window_bounds = array<i64: 128, 128>}, {pipeline_mode = #tpu.pipeline_mode<synchronous>, transform_indices = @transform_2, window_bounds = array<i64: 1, 128>}, {pipeline_mode = #tpu.pipeline_mode<synchronous>, transform_indices = @transform_3, window_bounds = array<i64: 128, 128>}, {pipeline_mode = #tpu.pipeline_mode<synchronous>, transform_indices = @transform_4, window_bounds = array<i64: 1, 128>}, {pipeline_mode = #tpu.pipeline_mode<synchronous>, transform_indices = @transform_5, window_bounds = array<i64: 16, 128>}]} {
    tpu.enqueue_dma source(%arg4 : memref<16x128xf32, #tpu.memory_space<any>>) target(%arg10 : memref<16x128xf32, #tpu.memory_space<vmem>>) target_semaphore(%arg12 : memref<!tpu.dma_semaphore, #tpu.memory_space<semaphore_mem>>)
    tpu.wait_dma2 semaphore(%arg12 : memref<!tpu.dma_semaphore, #tpu.memory_space<semaphore_mem>>) src(%arg4 : memref<16x128xf32, #tpu.memory_space<any>>) dst(%arg10 : memref<16x128xf32, #tpu.memory_space<vmem>>)
    %c0 = arith.constant 0 : index
    %c0_0 = arith.constant 0 : index
    %0 = vector.load %arg5[%c0, %c0_0] : memref<128x128xf32, #tpu.memory_space<vmem>>, vector<128x128xf32>
    %c0_1 = arith.constant 0 : index
    %c0_2 = arith.constant 0 : index
    %1 = vector.load %arg6[%c0_1, %c0_2] : memref<1x128xf32, #tpu.memory_space<vmem>>, vector<1x128xf32>
    %c0_i32 = arith.constant 0 : i32
    %c3_i32 = arith.constant 3 : i32
    %2 = arith.addi %c0_i32, %c3_i32 : i32
    %c1_i32 = arith.constant 1 : i32
    scf.for %arg13 = %c0_i32 to %2 step %c1_i32  : i32 {
      %c8_i32 = arith.constant 8 : i32
      %10 = arith.muli %arg13, %c8_i32 : i32
      %c0_i32_12 = arith.constant 0 : i32
      %11 = arith.addi %10, %c0_i32_12 : i32
      %12 = arith.index_cast %11 : i32 to index
      %13 = memref.load %arg2[%12] : memref<24xi32, #tpu.memory_space<smem>>
      %14 = arith.index_cast %13 : i32 to index
      %c0_13 = arith.constant 0 : index
      %15 = vector.load %arg10[%14, %c0_13] : memref<16x128xf32, #tpu.memory_space<vmem>>, vector<1x128xf32>
      %16 = arith.index_cast %11 : i32 to index
      %17 = memref.load %arg3[%16] : memref<24xi32, #tpu.memory_space<smem>>
      %18 = arith.index_cast %17 : i32 to index
      %c0_14 = arith.constant 0 : index
      %19 = vector.load %arg10[%18, %c0_14] : memref<16x128xf32, #tpu.memory_space<vmem>>, vector<1x128xf32>
      %20 = arith.addf %15, %19 : vector<1x128xf32>
      %21 = arith.index_cast %c0_i32_12 : i32 to index
      %c0_15 = arith.constant 0 : index
      %22 = vector.load %arg11[%21, %c0_15] : memref<8x128xf32, #tpu.memory_space<vmem>>, vector<1x128xf32>
      tpu.vector_store %arg11[%21, %c0_15], %20 {strides = array<i32>} : memref<8x128xf32, #tpu.memory_space<vmem>>, vector<1x128xf32>,
      %c1_i32_16 = arith.constant 1 : i32
      %23 = arith.addi %10, %c1_i32_16 : i32
      %24 = arith.index_cast %23 : i32 to index
      %25 = memref.load %arg2[%24] : memref<24xi32, #tpu.memory_space<smem>>
      %26 = arith.index_cast %25 : i32 to index
      %c0_17 = arith.constant 0 : index
      %27 = vector.load %arg10[%26, %c0_17] : memref<16x128xf32, #tpu.memory_space<vmem>>, vector<1x128xf32>
      %28 = arith.index_cast %23 : i32 to index
      %29 = memref.load %arg3[%28] : memref<24xi32, #tpu.memory_space<smem>>
      %30 = arith.index_cast %29 : i32 to index
      %c0_18 = arith.constant 0 : index
      %31 = vector.load %arg10[%30, %c0_18] : memref<16x128xf32, #tpu.memory_space<vmem>>, vector<1x128xf32>
      %32 = arith.addf %27, %31 : vector<1x128xf32>
      %33 = arith.index_cast %c1_i32_16 : i32 to index
      %c0_19 = arith.constant 0 : index
      %34 = vector.load %arg11[%33, %c0_19] : memref<8x128xf32, #tpu.memory_space<vmem>>, vector<1x128xf32>
      tpu.vector_store %arg11[%33, %c0_19], %32 {strides = array<i32>} : memref<8x128xf32, #tpu.memory_space<vmem>>, vector<1x128xf32>,
      %c2_i32 = arith.constant 2 : i32
      %35 = arith.addi %10, %c2_i32 : i32
      %36 = arith.index_cast %35 : i32 to index
      %37 = memref.load %arg2[%36] : memref<24xi32, #tpu.memory_space<smem>>
      %38 = arith.index_cast %37 : i32 to index
      %c0_20 = arith.constant 0 : index
      %39 = vector.load %arg10[%38, %c0_20] : memref<16x128xf32, #tpu.memory_space<vmem>>, vector<1x128xf32>
      %40 = arith.index_cast %35 : i32 to index
      %41 = memref.load %arg3[%40] : memref<24xi32, #tpu.memory_space<smem>>
      %42 = arith.index_cast %41 : i32 to index
      %c0_21 = arith.constant 0 : index
      %43 = vector.load %arg10[%42, %c0_21] : memref<16x128xf32, #tpu.memory_space<vmem>>, vector<1x128xf32>
      %44 = arith.addf %39, %43 : vector<1x128xf32>
      %45 = arith.index_cast %c2_i32 : i32 to index
      %c0_22 = arith.constant 0 : index
      %46 = vector.load %arg11[%45, %c0_22] : memref<8x128xf32, #tpu.memory_space<vmem>>, vector<1x128xf32>
      tpu.vector_store %arg11[%45, %c0_22], %44 {strides = array<i32>} : memref<8x128xf32, #tpu.memory_space<vmem>>, vector<1x128xf32>,
      %c3_i32_23 = arith.constant 3 : i32
      %47 = arith.addi %10, %c3_i32_23 : i32
      %48 = arith.index_cast %47 : i32 to index
      %49 = memref.load %arg2[%48] : memref<24xi32, #tpu.memory_space<smem>>
      %50 = arith.index_cast %49 : i32 to index
      %c0_24 = arith.constant 0 : index
      %51 = vector.load %arg10[%50, %c0_24] : memref<16x128xf32, #tpu.memory_space<vmem>>, vector<1x128xf32>
      %52 = arith.index_cast %47 : i32 to index
      %53 = memref.load %arg3[%52] : memref<24xi32, #tpu.memory_space<smem>>
      %54 = arith.index_cast %53 : i32 to index
      %c0_25 = arith.constant 0 : index
      %55 = vector.load %arg10[%54, %c0_25] : memref<16x128xf32, #tpu.memory_space<vmem>>, vector<1x128xf32>
      %56 = arith.addf %51, %55 : vector<1x128xf32>
      %57 = arith.index_cast %c3_i32_23 : i32 to index
      %c0_26 = arith.constant 0 : index
      %58 = vector.load %arg11[%57, %c0_26] : memref<8x128xf32, #tpu.memory_space<vmem>>, vector<1x128xf32>
      tpu.vector_store %arg11[%57, %c0_26], %56 {strides = array<i32>} : memref<8x128xf32, #tpu.memory_space<vmem>>, vector<1x128xf32>,
      %c4_i32 = arith.constant 4 : i32
      %59 = arith.addi %10, %c4_i32 : i32
      %60 = arith.index_cast %59 : i32 to index
      %61 = memref.load %arg2[%60] : memref<24xi32, #tpu.memory_space<smem>>
      %62 = arith.index_cast %61 : i32 to index
      %c0_27 = arith.constant 0 : index
      %63 = vector.load %arg10[%62, %c0_27] : memref<16x128xf32, #tpu.memory_space<vmem>>, vector<1x128xf32>
      %64 = arith.index_cast %59 : i32 to index
      %65 = memref.load %arg3[%64] : memref<24xi32, #tpu.memory_space<smem>>
      %66 = arith.index_cast %65 : i32 to index
      %c0_28 = arith.constant 0 : index
      %67 = vector.load %arg10[%66, %c0_28] : memref<16x128xf32, #tpu.memory_space<vmem>>, vector<1x128xf32>
      %68 = arith.addf %63, %67 : vector<1x128xf32>
      %69 = arith.index_cast %c4_i32 : i32 to index
      %c0_29 = arith.constant 0 : index
      %70 = vector.load %arg11[%69, %c0_29] : memref<8x128xf32, #tpu.memory_space<vmem>>, vector<1x128xf32>
      tpu.vector_store %arg11[%69, %c0_29], %68 {strides = array<i32>} : memref<8x128xf32, #tpu.memory_space<vmem>>, vector<1x128xf32>,
      %c5_i32 = arith.constant 5 : i32
      %71 = arith.addi %10, %c5_i32 : i32
      %72 = arith.index_cast %71 : i32 to index
      %73 = memref.load %arg2[%72] : memref<24xi32, #tpu.memory_space<smem>>
      %74 = arith.index_cast %73 : i32 to index
      %c0_30 = arith.constant 0 : index
      %75 = vector.load %arg10[%74, %c0_30] : memref<16x128xf32, #tpu.memory_space<vmem>>, vector<1x128xf32>
      %76 = arith.index_cast %71 : i32 to index
      %77 = memref.load %arg3[%76] : memref<24xi32, #tpu.memory_space<smem>>
      %78 = arith.index_cast %77 : i32 to index
      %c0_31 = arith.constant 0 : index
      %79 = vector.load %arg10[%78, %c0_31] : memref<16x128xf32, #tpu.memory_space<vmem>>, vector<1x128xf32>
      %80 = arith.addf %75, %79 : vector<1x128xf32>
      %81 = arith.index_cast %c5_i32 : i32 to index
      %c0_32 = arith.constant 0 : index
      %82 = vector.load %arg11[%81, %c0_32] : memref<8x128xf32, #tpu.memory_space<vmem>>, vector<1x128xf32>
      tpu.vector_store %arg11[%81, %c0_32], %80 {strides = array<i32>} : memref<8x128xf32, #tpu.memory_space<vmem>>, vector<1x128xf32>,
      %c6_i32 = arith.constant 6 : i32
      %83 = arith.addi %10, %c6_i32 : i32
      %84 = arith.index_cast %83 : i32 to index
      %85 = memref.load %arg2[%84] : memref<24xi32, #tpu.memory_space<smem>>
      %86 = arith.index_cast %85 : i32 to index
      %c0_33 = arith.constant 0 : index
      %87 = vector.load %arg10[%86, %c0_33] : memref<16x128xf32, #tpu.memory_space<vmem>>, vector<1x128xf32>
      %88 = arith.index_cast %83 : i32 to index
      %89 = memref.load %arg3[%88] : memref<24xi32, #tpu.memory_space<smem>>
      %90 = arith.index_cast %89 : i32 to index
      %c0_34 = arith.constant 0 : index
      %91 = vector.load %arg10[%90, %c0_34] : memref<16x128xf32, #tpu.memory_space<vmem>>, vector<1x128xf32>
      %92 = arith.addf %87, %91 : vector<1x128xf32>
      %93 = arith.index_cast %c6_i32 : i32 to index
      %c0_35 = arith.constant 0 : index
      %94 = vector.load %arg11[%93, %c0_35] : memref<8x128xf32, #tpu.memory_space<vmem>>, vector<1x128xf32>
      tpu.vector_store %arg11[%93, %c0_35], %92 {strides = array<i32>} : memref<8x128xf32, #tpu.memory_space<vmem>>, vector<1x128xf32>,
      %c7_i32 = arith.constant 7 : i32
      %95 = arith.addi %10, %c7_i32 : i32
      %96 = arith.index_cast %95 : i32 to index
      %97 = memref.load %arg2[%96] : memref<24xi32, #tpu.memory_space<smem>>
      %98 = arith.index_cast %97 : i32 to index
      %c0_36 = arith.constant 0 : index
      %99 = vector.load %arg10[%98, %c0_36] : memref<16x128xf32, #tpu.memory_space<vmem>>, vector<1x128xf32>
      %100 = arith.index_cast %95 : i32 to index
      %101 = memref.load %arg3[%100] : memref<24xi32, #tpu.memory_space<smem>>
      %102 = arith.index_cast %101 : i32 to index
      %c0_37 = arith.constant 0 : index
      %103 = vector.load %arg10[%102, %c0_37] : memref<16x128xf32, #tpu.memory_space<vmem>>, vector<1x128xf32>
      %104 = arith.addf %99, %103 : vector<1x128xf32>
      %105 = arith.index_cast %c7_i32 : i32 to index
      %c0_38 = arith.constant 0 : index
      %106 = vector.load %arg11[%105, %c0_38] : memref<8x128xf32, #tpu.memory_space<vmem>>, vector<1x128xf32>
      tpu.vector_store %arg11[%105, %c0_38], %104 {strides = array<i32>} : memref<8x128xf32, #tpu.memory_space<vmem>>, vector<1x128xf32>,
      %c8_i32_39 = arith.constant 8 : i32
      %c0_40 = arith.constant 0 : index
      %c0_41 = arith.constant 0 : index
      %107 = vector.load %arg11[%c0_40, %c0_41] : memref<8x128xf32, #tpu.memory_space<vmem>>, vector<8x128xf32>
      %cst_42 = arith.constant dense<0.000000e+00> : vector<8x128xf32>
      %108 = tpu.matmul %107, %0, %cst_42 {dimension_numbers = #tpu.dot_dimension_numbers<[1], [0], [0], [1], [0, 0, 1, 1], [], []>} : vector<8x128xf32>, vector<128x128xf32>, vector<8x128xf32> -> vector<8x128xf32>
      %109 = vector.broadcast %1 : vector<1x128xf32> to vector<8x128xf32>
      %110 = arith.addf %108, %109 : vector<8x128xf32>
      %cst_43 = arith.constant 0.000000e+00 : f32
      %111 = vector.broadcast %cst_43 : f32 to vector<8x128xf32>
      %112 = arith.maximumf %110, %111 : vector<8x128xf32>
      %c0_44 = arith.constant 0 : index
      %c0_45 = arith.constant 0 : index
      %113 = vector.load %arg11[%c0_44, %c0_45] : memref<8x128xf32, #tpu.memory_space<vmem>>, vector<8x128xf32>
      tpu.vector_store %arg11[%c0_44, %c0_45], %112 {strides = array<i32>} : memref<8x128xf32, #tpu.memory_space<vmem>>, vector<8x128xf32>,
      %c0_i32_46 = arith.constant 0 : i32
      %114 = arith.addi %10, %c0_i32_46 : i32
      %115 = arith.index_cast %c0_i32_46 : i32 to index
      %c0_47 = arith.constant 0 : index
      %116 = vector.load %arg11[%115, %c0_47] : memref<8x128xf32, #tpu.memory_space<vmem>>, vector<1x128xf32>
      %117 = arith.index_cast %114 : i32 to index
      %118 = memref.load %arg1[%117] : memref<24xi32, #tpu.memory_space<smem>>
      %119 = arith.index_cast %118 : i32 to index
      %c0_48 = arith.constant 0 : index
      %120 = vector.load %arg10[%119, %c0_48] : memref<16x128xf32, #tpu.memory_space<vmem>>, vector<1x128xf32>
      tpu.vector_store %arg10[%119, %c0_48], %116 {strides = array<i32>} : memref<16x128xf32, #tpu.memory_space<vmem>>, vector<1x128xf32>,
      %c1_i32_49 = arith.constant 1 : i32
      %121 = arith.addi %10, %c1_i32_49 : i32
      %122 = arith.index_cast %c1_i32_49 : i32 to index
      %c0_50 = arith.constant 0 : index
      %123 = vector.load %arg11[%122, %c0_50] : memref<8x128xf32, #tpu.memory_space<vmem>>, vector<1x128xf32>
      %124 = arith.index_cast %121 : i32 to index
      %125 = memref.load %arg1[%124] : memref<24xi32, #tpu.memory_space<smem>>
      %126 = arith.index_cast %125 : i32 to index
      %c0_51 = arith.constant 0 : index
      %127 = vector.load %arg10[%126, %c0_51] : memref<16x128xf32, #tpu.memory_space<vmem>>, vector<1x128xf32>
      tpu.vector_store %arg10[%126, %c0_51], %123 {strides = array<i32>} : memref<16x128xf32, #tpu.memory_space<vmem>>, vector<1x128xf32>,
      %c2_i32_52 = arith.constant 2 : i32
      %128 = arith.addi %10, %c2_i32_52 : i32
      %129 = arith.index_cast %c2_i32_52 : i32 to index
      %c0_53 = arith.constant 0 : index
      %130 = vector.load %arg11[%129, %c0_53] : memref<8x128xf32, #tpu.memory_space<vmem>>, vector<1x128xf32>
      %131 = arith.index_cast %128 : i32 to index
      %132 = memref.load %arg1[%131] : memref<24xi32, #tpu.memory_space<smem>>
      %133 = arith.index_cast %132 : i32 to index
      %c0_54 = arith.constant 0 : index
      %134 = vector.load %arg10[%133, %c0_54] : memref<16x128xf32, #tpu.memory_space<vmem>>, vector<1x128xf32>
      tpu.vector_store %arg10[%133, %c0_54], %130 {strides = array<i32>} : memref<16x128xf32, #tpu.memory_space<vmem>>, vector<1x128xf32>,
      %c3_i32_55 = arith.constant 3 : i32
      %135 = arith.addi %10, %c3_i32_55 : i32
      %136 = arith.index_cast %c3_i32_55 : i32 to index
      %c0_56 = arith.constant 0 : index
      %137 = vector.load %arg11[%136, %c0_56] : memref<8x128xf32, #tpu.memory_space<vmem>>, vector<1x128xf32>
      %138 = arith.index_cast %135 : i32 to index
      %139 = memref.load %arg1[%138] : memref<24xi32, #tpu.memory_space<smem>>
      %140 = arith.index_cast %139 : i32 to index
      %c0_57 = arith.constant 0 : index
      %141 = vector.load %arg10[%140, %c0_57] : memref<16x128xf32, #tpu.memory_space<vmem>>, vector<1x128xf32>
      tpu.vector_store %arg10[%140, %c0_57], %137 {strides = array<i32>} : memref<16x128xf32, #tpu.memory_space<vmem>>, vector<1x128xf32>,
      %c4_i32_58 = arith.constant 4 : i32
      %142 = arith.addi %10, %c4_i32_58 : i32
      %143 = arith.index_cast %c4_i32_58 : i32 to index
      %c0_59 = arith.constant 0 : index
      %144 = vector.load %arg11[%143, %c0_59] : memref<8x128xf32, #tpu.memory_space<vmem>>, vector<1x128xf32>
      %145 = arith.index_cast %142 : i32 to index
      %146 = memref.load %arg1[%145] : memref<24xi32, #tpu.memory_space<smem>>
      %147 = arith.index_cast %146 : i32 to index
      %c0_60 = arith.constant 0 : index
      %148 = vector.load %arg10[%147, %c0_60] : memref<16x128xf32, #tpu.memory_space<vmem>>, vector<1x128xf32>
      tpu.vector_store %arg10[%147, %c0_60], %144 {strides = array<i32>} : memref<16x128xf32, #tpu.memory_space<vmem>>, vector<1x128xf32>,
      %c5_i32_61 = arith.constant 5 : i32
      %149 = arith.addi %10, %c5_i32_61 : i32
      %150 = arith.index_cast %c5_i32_61 : i32 to index
      %c0_62 = arith.constant 0 : index
      %151 = vector.load %arg11[%150, %c0_62] : memref<8x128xf32, #tpu.memory_space<vmem>>, vector<1x128xf32>
      %152 = arith.index_cast %149 : i32 to index
      %153 = memref.load %arg1[%152] : memref<24xi32, #tpu.memory_space<smem>>
      %154 = arith.index_cast %153 : i32 to index
      %c0_63 = arith.constant 0 : index
      %155 = vector.load %arg10[%154, %c0_63] : memref<16x128xf32, #tpu.memory_space<vmem>>, vector<1x128xf32>
      tpu.vector_store %arg10[%154, %c0_63], %151 {strides = array<i32>} : memref<16x128xf32, #tpu.memory_space<vmem>>, vector<1x128xf32>,
      %c6_i32_64 = arith.constant 6 : i32
      %156 = arith.addi %10, %c6_i32_64 : i32
      %157 = arith.index_cast %c6_i32_64 : i32 to index
      %c0_65 = arith.constant 0 : index
      %158 = vector.load %arg11[%157, %c0_65] : memref<8x128xf32, #tpu.memory_space<vmem>>, vector<1x128xf32>
      %159 = arith.index_cast %156 : i32 to index
      %160 = memref.load %arg1[%159] : memref<24xi32, #tpu.memory_space<smem>>
      %161 = arith.index_cast %160 : i32 to index
      %c0_66 = arith.constant 0 : index
      %162 = vector.load %arg10[%161, %c0_66] : memref<16x128xf32, #tpu.memory_space<vmem>>, vector<1x128xf32>
      tpu.vector_store %arg10[%161, %c0_66], %158 {strides = array<i32>} : memref<16x128xf32, #tpu.memory_space<vmem>>, vector<1x128xf32>,
      %c7_i32_67 = arith.constant 7 : i32
      %163 = arith.addi %10, %c7_i32_67 : i32
      %164 = arith.index_cast %c7_i32_67 : i32 to index
      %c0_68 = arith.constant 0 : index
      %165 = vector.load %arg11[%164, %c0_68] : memref<8x128xf32, #tpu.memory_space<vmem>>, vector<1x128xf32>
      %166 = arith.index_cast %163 : i32 to index
      %167 = memref.load %arg1[%166] : memref<24xi32, #tpu.memory_space<smem>>
      %168 = arith.index_cast %167 : i32 to index
      %c0_69 = arith.constant 0 : index
      %169 = vector.load %arg10[%168, %c0_69] : memref<16x128xf32, #tpu.memory_space<vmem>>, vector<1x128xf32>
      tpu.vector_store %arg10[%168, %c0_69], %165 {strides = array<i32>} : memref<16x128xf32, #tpu.memory_space<vmem>>, vector<1x128xf32>,
      %c8_i32_70 = arith.constant 8 : i32
    }
    %c3_i32_3 = arith.constant 3 : i32
    %c0_4 = arith.constant 0 : index
    %c0_5 = arith.constant 0 : index
    %3 = vector.load %arg10[%c0_4, %c0_5] : memref<16x128xf32, #tpu.memory_space<vmem>>, vector<16x128xf32>
    %c0_6 = arith.constant 0 : index
    %c0_7 = arith.constant 0 : index
    %4 = vector.load %arg7[%c0_6, %c0_7] : memref<128x128xf32, #tpu.memory_space<vmem>>, vector<128x128xf32>
    %cst = arith.constant dense<0.000000e+00> : vector<16x128xf32>
    %5 = tpu.matmul %3, %4, %cst {dimension_numbers = #tpu.dot_dimension_numbers<[1], [0], [0], [1], [0, 0, 1, 1], [], []>} : vector<16x128xf32>, vector<128x128xf32>, vector<16x128xf32> -> vector<16x128xf32>
    %c0_8 = arith.constant 0 : index
    %c0_9 = arith.constant 0 : index
    %6 = vector.load %arg8[%c0_8, %c0_9] : memref<1x128xf32, #tpu.memory_space<vmem>>, vector<1x128xf32>
    %7 = vector.broadcast %6 : vector<1x128xf32> to vector<16x128xf32>
    %8 = arith.addf %5, %7 : vector<16x128xf32>
    %c0_10 = arith.constant 0 : index
    %c0_11 = arith.constant 0 : index
    %9 = vector.load %arg9[%c0_10, %c0_11] : memref<16x128xf32, #tpu.memory_space<vmem>>, vector<16x128xf32>
    tpu.vector_store %arg9[%c0_10, %c0_11], %8 {strides = array<i32>} : memref<16x128xf32, #tpu.memory_space<vmem>>, vector<16x128xf32>,
    return
  }
  func.func @transform_1(%arg0: i32, %arg1: memref<24xi32, #tpu.memory_space<smem>>, %arg2: memref<24xi32, #tpu.memory_space<smem>>, %arg3: memref<24xi32, #tpu.memory_space<smem>>) -> (i32, i32) {
    %c0_i32 = arith.constant 0 : i32
    %c0_i32_0 = arith.constant 0 : i32
    %c0_i32_1 = arith.constant 0 : i32
    return %c0_i32, %c0_i32_0 : i32, i32
  }
  func.func @transform_2(%arg0: i32, %arg1: memref<24xi32, #tpu.memory_space<smem>>, %arg2: memref<24xi32, #tpu.memory_space<smem>>, %arg3: memref<24xi32, #tpu.memory_space<smem>>) -> (i32, i32) {
    %c0_i32 = arith.constant 0 : i32
    %c0_i32_0 = arith.constant 0 : i32
    %c0_i32_1 = arith.constant 0 : i32
    return %c0_i32, %c0_i32_0 : i32, i32
  }
  func.func @transform_3(%arg0: i32, %arg1: memref<24xi32, #tpu.memory_space<smem>>, %arg2: memref<24xi32, #tpu.memory_space<smem>>, %arg3: memref<24xi32, #tpu.memory_space<smem>>) -> (i32, i32) {
    %c0_i32 = arith.constant 0 : i32
    %c0_i32_0 = arith.constant 0 : i32
    %c0_i32_1 = arith.constant 0 : i32
    return %c0_i32, %c0_i32_0 : i32, i32
  }
  func.func @transform_4(%arg0: i32, %arg1: memref<24xi32, #tpu.memory_space<smem>>, %arg2: memref<24xi32, #tpu.memory_space<smem>>, %arg3: memref<24xi32, #tpu.memory_space<smem>>) -> (i32, i32) {
    %c0_i32 = arith.constant 0 : i32
    %c0_i32_0 = arith.constant 0 : i32
    %c0_i32_1 = arith.constant 0 : i32
    return %c0_i32, %c0_i32_0 : i32, i32
  }
  func.func @transform_5(%arg0: i32, %arg1: memref<24xi32, #tpu.memory_space<smem>>, %arg2: memref<24xi32, #tpu.memory_space<smem>>, %arg3: memref<24xi32, #tpu.memory_space<smem>>) -> (i32, i32) {
    %c0_i32 = arith.constant 0 : i32
    %c0_i32_0 = arith.constant 0 : i32
    %c0_i32_1 = arith.constant 0 : i32
    return %c0_i32, %c0_i32_0 : i32, i32
  }
}

</mosaic_0001>

<llo_original>
// kernel: tpu_custom_call.1
$region0: #{tpu_custom_call.1}
  #allocation0 [shape = 'u32[]', space=smem, size = 0x4, offset = 0x4, fixed_abs, tag = 'smem constant byte address 0x4 - core index']
  #allocation1 [shape = 'u32[144,128]{1,0:T(1,128)}', space=vmem, size = 0x12000, scoped, tag = 'internal scratch']
  #allocation2 [shape = 'f32[16,128]{1,0:T(8,128)}', space=vmem, size = 0x2000, scoped, tag = 'scratch operand']
  #allocation3 [shape = 'f32[8,128]{1,0:T(8,128)}', space=vmem, size = 0x1000, scoped, tag = 'scratch operand']
  #allocation4 [shape = 's32[1]{0}', space=sflag, size = 0x4, scoped, tag = 'scratch operand']
  #allocation5 [shape = 's32[1]{0}', space=sflag, size = 0x4, scoped, tag = 'scoped memory for tpu_custom_call.1']
  #allocation6 [shape = 'u8[512]{0}', space=smem, size = 0x200, scoped, tag = 'prefetched SMEM operand 0']
  #allocation7 [shape = 'u8[512]{0}', space=smem, size = 0x200, scoped, tag = 'prefetched SMEM operand 1']
  #allocation8 [shape = 'u8[512]{0}', space=smem, size = 0x200, scoped, tag = 'prefetched SMEM operand 2']
  #allocation15 [shape = 's32[]', space=sflag, size = 0x4, offset = 0, fixed_abs, tag = 'sflag constant byte address 0x0 - dummy sync flag']
  #allocation16 [shape = 's32[]', space=sflag, size = 0x4, offset = 0, fixed_abs, tag = 'sflag constant byte address 0x0 - dummy sync flag']
  #allocation17 [shape = 'u32[]', space=smem, size = 0x4, offset = 0x44, fixed_abs, tag = 'smem constant byte address 0x44 - assertion arg 0']
  #allocation18 [shape = 'u32[]', space=smem, size = 0x4, offset = 0x48, fixed_abs, tag = 'smem constant byte address 0x48 - assertion arg 1']
  %s0 = inlined_call_operand.hbm [shape: s32[24], index: 0, kind: input, shape index: {}]
  %s1 = inlined_call_operand.vmem [shape: s32[24], index: 1, kind: input, shape index: {}]
  %s2 = inlined_call_operand.vmem [shape: s32[24], index: 2, kind: input, shape index: {}]
  %s3 = inlined_call_operand.hbm [shape: f32[16,128], index: 3, kind: input, shape index: {}]
  %s4 = inlined_call_operand.hbm [shape: f32[128,128], index: 4, kind: input, shape index: {}]
  %s5 = inlined_call_operand.vmem [shape: f32[1,128], index: 5, kind: input, shape index: {}]
  %s6 = inlined_call_operand.hbm [shape: f32[128,128], index: 6, kind: input, shape index: {}]
  %s7 = inlined_call_operand.vmem [shape: f32[1,128], index: 7, kind: input, shape index: {}]
  %s8 = inlined_call_operand.hbm [shape: f32[16,128], index: 8, kind: output, shape index: {}]
  %s9 = sld [smem:[#allocation0]]
  $region45: #{tpu_custom_call.1} parent=0
    _
  %s11 = ssub.s32 1, %s9
  %s12 = scalar_select 0, %s11, %s9
  %14 = dma.hbm_to_smem %s0, 16, [#allocation6], [#allocation5]
  %s15 = sshll.u32 %s1, 4
  %s16 = int_to_ptr.vmem [resolvable:$true] %s15
  %18 = dma.vmem_to_smem %s16, 16, [#allocation7], [#allocation5]
  %s19 = sshll.u32 %s2, 4
  %s20 = int_to_ptr.vmem [resolvable:$true] %s19
  %22 = dma.vmem_to_smem %s20, 16, [#allocation8], [#allocation5]
  %23 = dma.done [#allocation5], 48
  %24 = sfence
  $region1: #{tpu_custom_call.1} parent=0
    #allocation9 [shape = 'u8[65536]{0}', space=vmem, size = 0x10000, scoped, tag = 'input window, operand 4, single buffered']
    #allocation10 [shape = 's32[1]{0}', space=sflag, size = 0x4, scoped, tag = 'scoped memory for tpu_custom_call.1']
    #allocation11 [shape = 's32[1]{0}', space=sflag, size = 0x4, scoped, tag = 'scoped memory for tpu_custom_call.1']
    #allocation12 [shape = 'u8[65536]{0}', space=vmem, size = 0x10000, scoped, tag = 'input window, operand 6, single buffered']
    #allocation13 [shape = 's32[1]{0}', space=sflag, size = 0x4, scoped, tag = 'scoped memory for tpu_custom_call.1']
    #allocation14 [shape = 'u8[8192]{0}', space=vmem, size = 0x2000, scoped, tag = 'output window, operand 0, single buffered']
    %25 = vsyncpa [#allocation10], 0
    %26 = vsyncpa [#allocation13], 0
    %27 = vsyncpa [#allocation11], 0
    // Predicated region
    $region2: #{tpu_custom_call.1} parent=1 // pred_check
      _
    $region3: #{tpu_custom_call.1} parent=1 // pred_check_branch
      %29 = sbr.rel (0) target = $region5
    $region4: #{tpu_custom_call.1} parent=1 // pred_region
      %s31 = ssub.s32 2048, 2048
      %32 = vsyncadd [#allocation10], %s31
      %s33 = sshll.u32 [#allocation9], 4
      %s34 = int_to_ptr.vmem [resolvable:$true] %s33
      %39 = dma.hbm_to_vmem [thread:$0]  %s4, 2048, %s34, [#allocation10], 128, 128, 8
    $region5: #{tpu_custom_call.1} parent=1 // pred_fallthru
      _
    // Predicated region
    $region6: #{tpu_custom_call.1} parent=1 // pred_check
      _
    $region7: #{tpu_custom_call.1} parent=1 // pred_check_branch
      %41 = sbr.rel (0) target = $region9
    $region8: #{tpu_custom_call.1} parent=1 // pred_region
      _
    $region9: #{tpu_custom_call.1} parent=1 // pred_fallthru
      _
    // Predicated region
    $region10: #{tpu_custom_call.1} parent=1 // pred_check
      _
    $region11: #{tpu_custom_call.1} parent=1 // pred_check_branch
      %43 = sbr.rel (0) target = $region13
    $region12: #{tpu_custom_call.1} parent=1 // pred_region
      %s45 = ssub.s32 2048, 2048
      %46 = vsyncadd [#allocation13], %s45
      %s47 = sshll.u32 [#allocation12], 4
      %s48 = int_to_ptr.vmem [resolvable:$true] %s47
      %53 = dma.hbm_to_vmem [thread:$0]  %s6, 2048, %s48, [#allocation13], 128, 128, 8
    $region13: #{tpu_custom_call.1} parent=1 // pred_fallthru
      _
    // Predicated region
    $region14: #{tpu_custom_call.1} parent=1 // pred_check
      _
    $region15: #{tpu_custom_call.1} parent=1 // pred_check_branch
      %55 = sbr.rel (0) target = $region17
    $region16: #{tpu_custom_call.1} parent=1 // pred_region
      _
    $region17: #{tpu_custom_call.1} parent=1 // pred_fallthru
      _
    // Predicated region
    $region18: #{tpu_custom_call.1} parent=1 // pred_check
      _
    $region19: #{tpu_custom_call.1} parent=1 // pred_check_branch
      %57 = sbr.rel (0) target = $region21
    $region20: #{tpu_custom_call.1} parent=1 // pred_region
      %58 = dma.done [#allocation10], 2048
    $region21: #{tpu_custom_call.1} parent=1 // pred_fallthru
      _
    // Predicated region
    $region22: #{tpu_custom_call.1} parent=1 // pred_check
      _
    $region23: #{tpu_custom_call.1} parent=1 // pred_check_branch
      %60 = sbr.rel (0) target = $region25
    $region24: #{tpu_custom_call.1} parent=1 // pred_region
      %61 = dma.done [#allocation13], 2048
    $region25: #{tpu_custom_call.1} parent=1 // pred_fallthru
      _
    // Predicated region
    $region26: #{tpu_custom_call.1} parent=1 // pred_check
      _
    $region27: #{tpu_custom_call.1} parent=1 // pred_check_branch
      %63 = sbr.rel target = $region29
    $region28: #{tpu_custom_call.1} parent=1 // pred_region
      %64 = sst [smem:[#allocation17]] [#allocation16]
      %65 = sst [smem:[#allocation18]] [#allocation15]
    $region29: #{tpu_custom_call.1} parent=1 // pred_fallthru
      _
    %67 = shalt.err (0)
    %s69 = sshll.u32 [#allocation2], 4
    %s70 = int_to_ptr.vmem [resolvable:$true] %s69
    %72 = dma.hbm_to_vmem [thread:$0]  %s3, 256, %s70, [#allocation4]
    %s73 = smul.u32 16, 1
    %s74 = sshll.u32 %s73, 4
    %75 = dma.done [#allocation4], %s74
    %v76 = vld [vmem:[#allocation9] sm:$0xff]
    %v77 = vld [vmem:[#allocation9 + $0x8] sm:$0xff]
    %v78 = vld [vmem:[#allocation9 + $0x10] sm:$0xff]
    %v79 = vld [vmem:[#allocation9 + $0x18] sm:$0xff]
    %v80 = vld [vmem:[#allocation9 + $0x20] sm:$0xff]
    %v81 = vld [vmem:[#allocation9 + $0x28] sm:$0xff]
    %v82 = vld [vmem:[#allocation9 + $0x30] sm:$0xff]
    %v83 = vld [vmem:[#allocation9 + $0x38] sm:$0xff]
    %v84 = vld [vmem:[#allocation9 + $0x40] sm:$0xff]
    %v85 = vld [vmem:[#allocation9 + $0x48] sm:$0xff]
    %v86 = vld [vmem:[#allocation9 + $0x50] sm:$0xff]
    %v87 = vld [vmem:[#allocation9 + $0x58] sm:$0xff]
    %v88 = vld [vmem:[#allocation9 + $0x60] sm:$0xff]
    %v89 = vld [vmem:[#allocation9 + $0x68] sm:$0xff]
    %v90 = vld [vmem:[#allocation9 + $0x70] sm:$0xff]
    %v91 = vld [vmem:[#allocation9 + $0x78] sm:$0xff]
    %v92 = vld [vmem:[%s5] sm:$0x1]
    loop: start=0, step=1, limit=3
    $region30: #{tpu_custom_call.1} parent=1 // loop_pre_header
      _
    $region31: #{tpu_custom_call.1} parent=1 // loop_header
      %s94 = sphi 0, %s98
      %p95 = scmp.ge.s32.totalorder %s94, 3
    $region32: #{tpu_custom_call.1} parent=1 // loop_header_branch
      %97 = sbr.rel (%p95) target = $region36
    $region33: #{tpu_custom_call.1} parent=1 // loop_body
      %s99 = smul.u32 %s94, 8
      %s100 = sld [smem:[#allocation7 + %s99]]
      %s101 = scalar_lea.vmem [#allocation2], %s100
      %v102 = vld [vmem:[%s101] sm:$0x1]
      %s103 = sld [smem:[#allocation8 + %s99]]
      %s104 = scalar_lea.vmem [#allocation2], %s103
      %v105 = vld [vmem:[%s104] sm:$0x1]
      %v106 = vadd.f32 %v102, %v105
      %107 = vst [vmem:[#allocation3] sm:$0x1] %v106
      %s108 = sadd.s32 %s99, 1
      %s109 = sld [smem:[#allocation7 + %s108]]
      %s110 = scalar_lea.vmem [#allocation2], %s109
      %v111 = vld [vmem:[%s110] sm:$0x1]
      %s112 = sld [smem:[#allocation8 + %s108]]
      %s113 = scalar_lea.vmem [#allocation2], %s112
      %v114 = vld [vmem:[%s113] sm:$0x1]
      %v115 = vadd.f32 %v111, %v114
      %116 = vst [vmem:[#allocation3 + $0x1] sm:$0x1] %v115
      %s117 = sadd.s32 %s99, 2
      %s118 = sld [smem:[#allocation7 + %s117]]
      %s119 = scalar_lea.vmem [#allocation2], %s118
      %v120 = vld [vmem:[%s119] sm:$0x1]
      %s121 = sld [smem:[#allocation8 + %s117]]
      %s122 = scalar_lea.vmem [#allocation2], %s121
      %v123 = vld [vmem:[%s122] sm:$0x1]
      %v124 = vadd.f32 %v120, %v123
      %125 = vst [vmem:[#allocation3 + $0x2] sm:$0x1] %v124
      %s126 = sadd.s32 %s99, 3
      %s127 = sld [smem:[#allocation7 + %s126]]
      %s128 = scalar_lea.vmem [#allocation2], %s127
      %v129 = vld [vmem:[%s128] sm:$0x1]
      %s130 = sld [smem:[#allocation8 + %s126]]
      %s131 = scalar_lea.vmem [#allocation2], %s130
      %v132 = vld [vmem:[%s131] sm:$0x1]
      %v133 = vadd.f32 %v129, %v132
      %134 = vst [vmem:[#allocation3 + $0x3] sm:$0x1] %v133
      %s135 = sadd.s32 %s99, 4
      %s136 = sld [smem:[#allocation7 + %s135]]
      %s137 = scalar_lea.vmem [#allocation2], %s136
      %v138 = vld [vmem:[%s137] sm:$0x1]
      %s139 = sld [smem:[#allocation8 + %s135]]
      %s140 = scalar_lea.vmem [#allocation2], %s139
      %v141 = vld [vmem:[%s140] sm:$0x1]
      %v142 = vadd.f32 %v138, %v141
      %143 = vst [vmem:[#allocation3 + $0x4] sm:$0x1] %v142
      %s144 = sadd.s32 %s99, 5
      %s145 = sld [smem:[#allocation7 + %s144]]
      %s146 = scalar_lea.vmem [#allocation2], %s145
      %v147 = vld [vmem:[%s146] sm:$0x1]
      %s148 = sld [smem:[#allocation8 + %s144]]
      %s149 = scalar_lea.vmem [#allocation2], %s148
      %v150 = vld [vmem:[%s149] sm:$0x1]
      %v151 = vadd.f32 %v147, %v150
      %152 = vst [vmem:[#allocation3 + $0x5] sm:$0x1] %v151
      %s153 = sadd.s32 %s99, 6
      %s154 = sld [smem:[#allocation7 + %s153]]
      %s155 = scalar_lea.vmem [#allocation2], %s154
      %v156 = vld [vmem:[%s155] sm:$0x1]
      %s157 = sld [smem:[#allocation8 + %s153]]
      %s158 = scalar_lea.vmem [#allocation2], %s157
      %v159 = vld [vmem:[%s158] sm:$0x1]
      %v160 = vadd.f32 %v156, %v159
      %161 = vst [vmem:[#allocation3 + $0x6] sm:$0x1] %v160
      %s162 = sadd.s32 %s99, 7
      %s163 = sld [smem:[#allocation7 + %s162]]
      %s164 = scalar_lea.vmem [#allocation2], %s163
      %v165 = vld [vmem:[%s164] sm:$0x1]
      %s166 = sld [smem:[#allocation8 + %s162]]
      %s167 = scalar_lea.vmem [#allocation2], %s166
      %v168 = vld [vmem:[%s167] sm:$0x1]
      %v169 = vadd.f32 %v165, %v168
      %170 = vst [vmem:[#allocation3 + $0x7] sm:$0x1] %v169
      %v171 = vld [vmem:[#allocation3] sm:$0xff]
      %v173 = vlaneseq
      %v174 = vshrl.u32 %v173, 7
      %v175 = vsub.s32 0, %v174
      %v176 = vrot.slane %v92, %v175
      %178 = vmatprep.subr.mxu0 0.0
      %179 = vmatpush1.msra.mxu0 %v76
      %180 = vmatprep.subr.mxu0 0.0
      %181 = vmatpush1.msra.mxu0 %v77
      %182 = vmatprep.subr.mxu0 0.0
      %183 = vmatpush1.msra.mxu0 %v78
      %184 = vmatprep.subr.mxu0 0.0
      %185 = vmatpush1.msra.mxu0 %v79
      %186 = vmatprep.subr.mxu0 0.0
      %187 = vmatpush1.msra.mxu0 %v80
      %188 = vmatprep.subr.mxu0 0.0
      %189 = vmatpush1.msra.mxu0 %v81
      %190 = vmatprep.subr.mxu0 0.0
      %191 = vmatpush1.msra.mxu0 %v82
      %192 = vmatprep.subr.mxu0 0.0
      %193 = vmatpush1.msra.mxu0 %v83
      %194 = vmatprep.subr.mxu0 0.0
      %195 = vmatpush1.msra.mxu0 %v84
      %196 = vmatprep.subr.mxu0 0.0
      %197 = vmatpush1.msra.mxu0 %v85
      %198 = vmatprep.subr.mxu0 0.0
      %199 = vmatpush1.msra.mxu0 %v86
      %200 = vmatprep.subr.mxu0 0.0
      %201 = vmatpush1.msra.mxu0 %v87
      %202 = vmatprep.subr.mxu0 0.0
      %203 = vmatpush1.msra.mxu0 %v88
      %204 = vmatprep.subr.mxu0 0.0
      %205 = vmatpush1.msra.mxu0 %v89
      %206 = vmatprep.subr.mxu0 0.0
      %207 = vmatpush1.msra.mxu0 %v90
      %208 = vmatprep.subr.mxu0 0.0
      %209 = vmatpush1.msra.mxu0 %v91
      %210 = vmatprep.subr.mxu0 0.0
      %211 = vmatpush1.msra.mxu0 0.0
      %212 = vmatprep.subr.mxu0 0.0
      %213 = vmatpush1.msra.mxu0 0.0
      %214 = vmatprep.subr.mxu0 0.0
      %215 = vmatpush1.msra.mxu0 0.0
      %216 = vmatprep.subr.mxu0 0.0
      %217 = vmatpush1.msra.mxu0 0.0
      %218 = vmatprep.subr.mxu0 0.0
      %219 = vmatpush1.msra.mxu0 0.0
      %220 = vmatprep.subr.mxu0 0.0
      %221 = vmatpush1.msra.mxu0 0.0
      %222 = vmatprep.subr.mxu0 0.0
      %223 = vmatpush1.msra.mxu0 0.0
      %224 = vmatprep.subr.mxu0 0.0
      %225 = vmatpush1.msra.mxu0 0.0
      %226 = vmatprep.subr.mxu0 0.0
      %227 = vmatpush1.msra.mxu0 0.0
      %228 = vmatprep.subr.mxu0 0.0
      %229 = vmatpush1.msra.mxu0 0.0
      %230 = vmatprep.subr.mxu0 0.0
      %231 = vmatpush1.msra.mxu0 0.0
      %232 = vmatprep.subr.mxu0 0.0
      %233 = vmatpush1.msra.mxu0 0.0
      %234 = vmatprep.subr.mxu0 0.0
      %235 = vmatpush1.msra.mxu0 0.0
      %236 = vmatprep.subr.mxu0 0.0
      %237 = vmatpush1.msra.mxu0 0.0
      %238 = vmatprep.subr.mxu0 0.0
      %239 = vmatpush1.msra.mxu0 0.0
      %240 = vmatprep.subr.mxu0 0.0
      %241 = vmatpush1.msra.mxu0 0.0
      %242 = vmatprep.mubr.f32.mxu0 0.0
      %243 = vmatmul.mubr.f32.gmra.mrb[0].mxu0 %v171
      %v244 = vpop.f32.mrb[0].mxu0
      %v245 = vadd.f32 %v176, %v244
      %v246 = vpop.f32.mrb[0].mxu0
      %247 = vdwg.mxu0
      %v248 = vmax.f32 %v245, 0.0
      %249 = vst [vmem:[#allocation3] sm:$0xff] %v248
      %v250 = vld [vmem:[#allocation3] sm:$0x1]
      %s251 = sld [smem:[#allocation6 + %s99]]
      %s252 = scalar_lea.vmem [#allocation2], %s251
      %253 = vst [vmem:[%s252] sm:$0x1] %v250
      %v254 = vld [vmem:[#allocation3 + $0x1] sm:$0x1]
      %s255 = sld [smem:[#allocation6 + %s108]]
      %s256 = scalar_lea.vmem [#allocation2], %s255
      %257 = vst [vmem:[%s256] sm:$0x1] %v254
      %v258 = vld [vmem:[#allocation3 + $0x2] sm:$0x1]
      %s259 = sld [smem:[#allocation6 + %s117]]
      %s260 = scalar_lea.vmem [#allocation2], %s259
      %261 = vst [vmem:[%s260] sm:$0x1] %v258
      %v262 = vld [vmem:[#allocation3 + $0x3] sm:$0x1]
      %s263 = sld [smem:[#allocation6 + %s126]]
      %s264 = scalar_lea.vmem [#allocation2], %s263
      %265 = vst [vmem:[%s264] sm:$0x1] %v262
      %v266 = vld [vmem:[#allocation3 + $0x4] sm:$0x1]
      %s267 = sld [smem:[#allocation6 + %s135]]
      %s268 = scalar_lea.vmem [#allocation2], %s267
      %269 = vst [vmem:[%s268] sm:$0x1] %v266
      %v270 = vld [vmem:[#allocation3 + $0x5] sm:$0x1]
      %s271 = sld [smem:[#allocation6 + %s144]]
      %s272 = scalar_lea.vmem [#allocation2], %s271
      %273 = vst [vmem:[%s272] sm:$0x1] %v270
      %v274 = vld [vmem:[#allocation3 + $0x6] sm:$0x1]
      %s275 = sld [smem:[#allocation6 + %s153]]
      %s276 = scalar_lea.vmem [#allocation2], %s275
      %277 = vst [vmem:[%s276] sm:$0x1] %v274
      %v278 = vld [vmem:[#allocation3 + $0x7] sm:$0x1]
      %s279 = sld [smem:[#allocation6 + %s162]]
      %s280 = scalar_lea.vmem [#allocation2], %s279
      %281 = vst [vmem:[%s280] sm:$0x1] %v278
    $region34: #{tpu_custom_call.1} parent=1 // loop_footer
      %s98 = sadd.s32 1, %s94
    $region35: #{tpu_custom_call.1} parent=1 // loop_footer_branch
      %93 = sbr.rel target = $region31
    $region36: #{tpu_custom_call.1} parent=1 // loop_exit
      _
    %v282 = vld [vmem:[#allocation2] sm:$0xff]
    %v283 = vld [vmem:[#allocation2 + $0x8] sm:$0xff]
    %v284 = vld [vmem:[#allocation12] sm:$0xff]
    %v285 = vld [vmem:[#allocation12 + $0x8] sm:$0xff]
    %v286 = vld [vmem:[#allocation12 + $0x10] sm:$0xff]
    %v287 = vld [vmem:[#allocation12 + $0x18] sm:$0xff]
    %v288 = vld [vmem:[#allocation12 + $0x20] sm:$0xff]
    %v289 = vld [vmem:[#allocation12 + $0x28] sm:$0xff]
    %v290 = vld [vmem:[#allocation12 + $0x30] sm:$0xff]
    %v291 = vld [vmem:[#allocation12 + $0x38] sm:$0xff]
    %v292 = vld [vmem:[#allocation12 + $0x40] sm:$0xff]
    %v293 = vld [vmem:[#allocation12 + $0x48] sm:$0xff]
    %v294 = vld [vmem:[#allocation12 + $0x50] sm:$0xff]
    %v295 = vld [vmem:[#allocation12 + $0x58] sm:$0xff]
    %v296 = vld [vmem:[#allocation12 + $0x60] sm:$0xff]
    %v297 = vld [vmem:[#allocation12 + $0x68] sm:$0xff]
    %v298 = vld [vmem:[#allocation12 + $0x70] sm:$0xff]
    %v299 = vld [vmem:[#allocation12 + $0x78] sm:$0xff]
    %v300 = vld [vmem:[%s7] sm:$0x1]
    %v302 = vlaneseq
    %v303 = vshrl.u32 %v302, 7
    %v304 = vsub.s32 0, %v303
    %v305 = vrot.slane %v300, %v304
    %307 = vmatprep.subr.mxu0 0.0
    %308 = vmatpush1.msra.mxu0 %v284
    %309 = vmatprep.subr.mxu0 0.0
    %310 = vmatpush1.msra.mxu0 %v285
    %311 = vmatprep.subr.mxu0 0.0
    %312 = vmatpush1.msra.mxu0 %v286
    %313 = vmatprep.subr.mxu0 0.0
    %314 = vmatpush1.msra.mxu0 %v287
    %315 = vmatprep.subr.mxu0 0.0
    %316 = vmatpush1.msra.mxu0 %v288
    %317 = vmatprep.subr.mxu0 0.0
    %318 = vmatpush1.msra.mxu0 %v289
    %319 = vmatprep.subr.mxu0 0.0
    %320 = vmatpush1.msra.mxu0 %v290
    %321 = vmatprep.subr.mxu0 0.0
    %322 = vmatpush1.msra.mxu0 %v291
    %323 = vmatprep.subr.mxu0 0.0
    %324 = vmatpush1.msra.mxu0 %v292
    %325 = vmatprep.subr.mxu0 0.0
    %326 = vmatpush1.msra.mxu0 %v293
    %327 = vmatprep.subr.mxu0 0.0
    %328 = vmatpush1.msra.mxu0 %v294
    %329 = vmatprep.subr.mxu0 0.0
    %330 = vmatpush1.msra.mxu0 %v295
    %331 = vmatprep.subr.mxu0 0.0
    %332 = vmatpush1.msra.mxu0 %v296
    %333 = vmatprep.subr.mxu0 0.0
    %334 = vmatpush1.msra.mxu0 %v297
    %335 = vmatprep.subr.mxu0 0.0
    %336 = vmatpush1.msra.mxu0 %v298
    %337 = vmatprep.subr.mxu0 0.0
    %338 = vmatpush1.msra.mxu0 %v299
    %339 = vmatprep.subr.mxu0 0.0
    %340 = vmatpush1.msra.mxu0 0.0
    %341 = vmatprep.subr.mxu0 0.0
    %342 = vmatpush1.msra.mxu0 0.0
    %343 = vmatprep.subr.mxu0 0.0
    %344 = vmatpush1.msra.mxu0 0.0
    %345 = vmatprep.subr.mxu0 0.0
    %346 = vmatpush1.msra.mxu0 0.0
    %347 = vmatprep.subr.mxu0 0.0
    %348 = vmatpush1.msra.mxu0 0.0
    %349 = vmatprep.subr.mxu0 0.0
    %350 = vmatpush1.msra.mxu0 0.0
    %351 = vmatprep.subr.mxu0 0.0
    %352 = vmatpush1.msra.mxu0 0.0
    %353 = vmatprep.subr.mxu0 0.0
    %354 = vmatpush1.msra.mxu0 0.0
    %355 = vmatprep.subr.mxu0 0.0
    %356 = vmatpush1.msra.mxu0 0.0
    %357 = vmatprep.subr.mxu0 0.0
    %358 = vmatpush1.msra.mxu0 0.0
    %359 = vmatprep.subr.mxu0 0.0
    %360 = vmatpush1.msra.mxu0 0.0
    %361 = vmatprep.subr.mxu0 0.0
    %362 = vmatpush1.msra.mxu0 0.0
    %363 = vmatprep.subr.mxu0 0.0
    %364 = vmatpush1.msra.mxu0 0.0
    %365 = vmatprep.subr.mxu0 0.0
    %366 = vmatpush1.msra.mxu0 0.0
    %367 = vmatprep.subr.mxu0 0.0
    %368 = vmatpush1.msra.mxu0 0.0
    %369 = vmatprep.subr.mxu0 0.0
    %370 = vmatpush1.msra.mxu0 0.0
    %371 = vmatprep.mubr.f32.mxu0 0.0
    %372 = vmatmul.mubr.f32.gmra.mrb[0].mxu0 %v282
    %v373 = vpop.f32.mrb[0].mxu0
    %v374 = vadd.f32 %v305, %v373
    %v375 = vpop.f32.mrb[0].mxu0
    %376 = vmatprep.mubr.f32.mxu0 0.0
    %377 = vmatmul.mubr.f32.gmra.mrb[0].mxu0 %v283
    %v378 = vpop.f32.mrb[0].mxu0
    %v379 = vadd.f32 %v305, %v378
    %v380 = vpop.f32.mrb[0].mxu0
    %381 = vdwg.mxu0
    %382 = vst [vmem:[#allocation14] sm:$0xff] %v374
    %383 = vst [vmem:[#allocation14 + $0x8] sm:$0xff] %v379
    // Predicated region
    $region37: #{tpu_custom_call.1} parent=1 // pred_check
      _
    $region38: #{tpu_custom_call.1} parent=1 // pred_check_branch
      %385 = sbr.rel (0) target = $region40
    $region39: #{tpu_custom_call.1} parent=1 // pred_region
      %s387 = ssub.s32 256, 256
      %388 = vsyncadd [#allocation11], %s387
      %s389 = sshll.u32 [#allocation14], 4
      %s390 = int_to_ptr.vmem [resolvable:$true] %s389
      %395 = dma.vmem_to_hbm [thread:$0]  %s390, 256, %s8, [#allocation11], 128, 128, 8
    $region40: #{tpu_custom_call.1} parent=1 // pred_fallthru
      _
    // Predicated region
    $region41: #{tpu_custom_call.1} parent=1 // pred_check
      _
    $region42: #{tpu_custom_call.1} parent=1 // pred_check_branch
      %397 = sbr.rel (0) target = $region44
    $region43: #{tpu_custom_call.1} parent=1 // pred_region
      %398 = dma.done [#allocation11], 256
    $region44: #{tpu_custom_call.1} parent=1 // pred_fallthru
      _
    %399 = vsyncpa [#allocation10], 1
    %400 = vsyncpa [#allocation13], 1
    %401 = vsyncpa [#allocation11], 1
  %402 = vsyncmov [#allocation4]
  %s403 = vpop.sfrf %402
  %p404 = scmp.eq.s32.totalorder %s403, 0
  %p405 = pneg %p404
  %407 = shalt.err (%p405)

</llo_original>
